<compile_context>
chip_gen: v7x
topology: tpu7x:2x2x1
jax: 0.10.0
libtpu: 0.0.40
codegen_flags: <defaults>
</compile_context>

<pallas_src>
import functools

import jax
import jax.numpy as jnp
from jax.experimental import pallas as pl
from jax.experimental.pallas import tpu as pltpu


def _self_info_kernel(x_ref, o_ref, *, eps):
    # Upcast to f32 so eps=1e-30 is representable for half-precision inputs.
    # add/mul/neg go to the VPU, log to the EUP -- all have slack vs. HBM.
    x = x_ref[...].astype(jnp.float32) + eps
    o_ref[...] = (-x * jnp.log(x)).astype(o_ref.dtype)


def _device_tuning():
    """(block_bytes, vmem_limit_bytes) per TPU generation.

    v5e: 4 MiB blocks already sit at the 0.82 TB/s roofline; default scoped VMEM
         is 16 MiB so the explicit 32 MiB limit is required.
    v6e: 128 MiB VMEM -> 8 MiB blocks with generous headroom.
    v7x: 64 MiB VMEM/TC -> 8 MiB blocks (4 live buffers = 32 MiB) / 48 MiB limit.
    """
    kind = ""
    try:
        kind = jax.devices()[0].device_kind.lower()
    except Exception:  # pragma: no cover - defensive (interpret mode, etc.)
        pass
    if "v2" in kind or "v3" in kind:
        return 2 * 1024 * 1024, 12 * 1024 * 1024
    if "v4" in kind or "v5" in kind:
        return 4 * 1024 * 1024, 32 * 1024 * 1024
    if "v6" in kind:
        return 8 * 1024 * 1024, 64 * 1024 * 1024
    # v7x and anything newer / unknown: conservative for 64 MiB/TC VMEM.
    return 8 * 1024 * 1024, 48 * 1024 * 1024


def self_information(x, eps=1e-30):
    """Computes -(x+eps)*log(x+eps) elementwise with a Pallas TPU kernel.

    Works for any shape/size; always exactly one HBM read + one HBM write.
    """
    orig_shape = x.shape
    dtype = x.dtype
    n = x.size
    if n == 0:
        return jnp.reshape(x, orig_shape)

    itemsize = jnp.dtype(dtype).itemsize
    block_bytes, vmem_limit = _device_tuning()

    kernel = functools.partial(_self_info_kernel, eps=float(eps))
    cparams = pltpu.CompilerParams(
        dimension_semantics=("parallel",),
        vmem_limit_bytes=vmem_limit,
    )
    # Advisory hint for XLA's scheduler: streaming op, 2*n*itemsize bytes, n logs.
    cost = pl.CostEstimate(flops=3 * n, transcendentals=n,
                           bytes_accessed=2 * n * itemsize)

    # ---- fast path: n is a multiple of 128 -> lane-dense (rows, lanes) slab
    # with full (8,128)-vreg density.  No padding, no slicing (reshape is free).
    lanes = next((c for c in (1024, 512, 256, 128) if n % c == 0), None)

    if lanes is not None:
        rows = n // lanes
        x2d = jnp.reshape(x, (rows, lanes))

        # dtype-aware sublane multiple for the second-to-last block dim.
        sublane = {4: 8, 2: 16, 1: 32}.get(itemsize, 8)
        bytes_per_row = lanes * itemsize
        target_rows = max(sublane,
                          (block_bytes // bytes_per_row) // sublane * sublane)
        if rows <= target_rows:
            tile_rows, grid = rows, 1          # full extent: always legal
        else:
            tile_rows, grid = target_rows, pl.cdiv(rows, target_rows)

        out2d = pl.pallas_call(
            kernel,
            out_shape=jax.ShapeDtypeStruct((rows, lanes), dtype),
            grid_spec=pltpu.PrefetchScalarGridSpec(
                num_scalar_prefetch=0,
                grid=(grid,),
                in_specs=[pl.BlockSpec((tile_rows, lanes), lambda i: (i, 0))],
                out_specs=pl.BlockSpec((tile_rows, lanes), lambda i: (i, 0)),
            ),
            compiler_params=cparams,
            cost_estimate=cost,
        )(x2d)
        return jnp.reshape(out2d, orig_shape)

    # ---- tail/odd path: n is NOT a multiple of 128.  View the flat array as
    # (1, n) and block along the lane dimension; Pallas masks the partial last
    # block's stores so no padding or post-slice copy is ever materialized.
    # Blocks are kept smaller here (block_bytes / 8 of real data) so that even
    # a worst-case sublane-padded (1, X) VMEM layout keeps the 4 live buffers
    # within the scoped-VMEM budget.
    x2d = jnp.reshape(x, (1, n))
    elems_per_block = max(128, (block_bytes // (8 * itemsize)) // 128 * 128)
    if n < 128:
        tile_cols, grid = n, 1                  # full-extent block: always legal
    else:
        tile_cols = min(elems_per_block, (n // 128) * 128)
        grid = pl.cdiv(n, tile_cols)            # partial last block -> masked

    out2d = pl.pallas_call(
        kernel,
        out_shape=jax.ShapeDtypeStruct((1, n), dtype),
        grid_spec=pltpu.PrefetchScalarGridSpec(
            num_scalar_prefetch=0,
            grid=(grid,),
            in_specs=[pl.BlockSpec((1, tile_cols), lambda i: (0, i))],
            out_specs=pl.BlockSpec((1, tile_cols), lambda i: (0, i)),
        ),
        compiler_params=cparams,
        cost_estimate=cost,
    )(x2d)
    return jnp.reshape(out2d, orig_shape)


if __name__ == "__main__":
    eps = 1e-30

    # NCHW "probability map" input, values in [0, 1) -- exercises the aligned
    # lane-dense fast path (2*4*16*16 = 2048 elements).
    x = jax.random.uniform(jax.random.PRNGKey(0), (2, 4, 16, 16),
                           dtype=jnp.float32, minval=0.0, maxval=1.0)
    y = jax.block_until_ready(self_information(x, eps=eps))
    ref = -(x + eps) * jnp.log(x + eps)
    assert y.shape == x.shape and y.dtype == x.dtype
    assert jnp.allclose(y, ref, rtol=1e-6, atol=1e-6)

    # Odd size (273 elements, not a multiple of 128) -- exercises the
    # pad-free masked-tail path.
    x2 = jax.random.uniform(jax.random.PRNGKey(1), (1, 3, 7, 13),
                            dtype=jnp.float32, minval=0.0, maxval=1.0)
    y2 = jax.block_until_ready(self_information(x2, eps=eps))
    ref2 = -(x2 + eps) * jnp.log(x2 + eps)
    assert y2.shape == x2.shape and y2.dtype == x2.dtype
    assert jnp.allclose(y2, ref2, rtol=1e-6, atol=1e-6)

    print("KERNEL_OK")
</pallas_src>

<mosaic_0001>
module attributes {stable_mosaic.version = 11 : i64} {
  func.func @_self_info_kernel(%arg0: i32, %arg1: memref<2x1024xf32, #tpu.memory_space<vmem>>, %arg2: memref<2x1024xf32, #tpu.memory_space<vmem>>) attributes {dimension_semantics = [#tpu.dimension_semantics<parallel>], iteration_bounds = array<i64: 1>, scalar_prefetch = 0 : i64, scratch_operands = 0 : i64, tpu.core_type = #tpu.core_type<tc>, window_params = [{transform_indices = @transform_0, window_bounds = array<i64: 2, 1024>}, {transform_indices = @transform_1, window_bounds = array<i64: 2, 1024>}]} {
    %c0 = arith.constant 0 : index
    %c0_0 = arith.constant 0 : index
    %0 = vector.load %arg1[%c0, %c0_0] : memref<2x1024xf32, #tpu.memory_space<vmem>>, vector<2x1024xf32>
    %cst = arith.constant 1.000000e-30 : f32
    %1 = vector.broadcast %cst : f32 to vector<2x1024xf32>
    %2 = arith.addf %0, %1 : vector<2x1024xf32>
    %cst_1 = arith.constant 0.000000e+00 : f32
    %3 = vector.broadcast %cst_1 : f32 to vector<2x1024xf32>
    %4 = arith.subf %3, %2 : vector<2x1024xf32>
    %5 = math.log %2 : vector<2x1024xf32>
    %6 = arith.mulf %4, %5 : vector<2x1024xf32>
    %c0_2 = arith.constant 0 : index
    %c0_3 = arith.constant 0 : index
    %7 = vector.load %arg2[%c0_2, %c0_3] : memref<2x1024xf32, #tpu.memory_space<vmem>>, vector<2x1024xf32>
    tpu.vector_store %arg2[%c0_2, %c0_3], %6 {strides = array<i32>} : memref<2x1024xf32, #tpu.memory_space<vmem>>, vector<2x1024xf32>,
    return
  }
  func.func @transform_0(%arg0: i32) -> (i32, i32) {
    %c0_i32 = arith.constant 0 : i32
    %c0_i32_0 = arith.constant 0 : i32
    return %arg0, %c0_i32 : i32, i32
  }
  func.func @transform_1(%arg0: i32) -> (i32, i32) {
    %c0_i32 = arith.constant 0 : i32
    %c0_i32_0 = arith.constant 0 : i32
    return %arg0, %c0_i32 : i32, i32
  }
}

</mosaic_0001>

<llo_original>
// kernel: tpu_custom_call.1
$region0: #{tpu_custom_call.1}
  #allocation0 [shape = 'u32[]', space=smem, size = 0x4, offset = 0x4, fixed_abs, tag = 'smem constant byte address 0x4 - core index']
  #allocation1 [shape = 'u32[144,128]{1,0:T(1,128)}', space=vmem, size = 0x12000, scoped, tag = 'internal scratch']
  %s0 = inlined_call_operand.hbm [shape: f32[2,1024], index: 0, kind: input, shape index: {}]
  %s1 = inlined_call_operand.hbm [shape: f32[2,1024], index: 1, kind: output, shape index: {}]
  %s2 = sld [smem:[#allocation0]]
  $region18: #{tpu_custom_call.1} parent=0
    _
  %s4 = ssub.s32 1, %s2
  %s5 = scalar_select 0, %s4, %s2
  $region1: #{tpu_custom_call.1} parent=0
    #allocation2 [shape = 'u8[8192]{0}', space=vmem, size = 0x2000, scoped, tag = 'input window, operand 0, single buffered']
    #allocation3 [shape = 's32[1]{0}', space=sflag, size = 0x4, scoped, tag = 'scoped memory for tpu_custom_call.1']
    #allocation4 [shape = 's32[1]{0}', space=sflag, size = 0x4, scoped, tag = 'scoped memory for tpu_custom_call.1']
    #allocation5 [shape = 'u8[8192]{0}', space=vmem, size = 0x2000, scoped, tag = 'output window, operand 0, single buffered']
    %6 = vsyncpa [#allocation3], 0
    %7 = vsyncpa [#allocation4], 0
    // Predicated region
    $region2: #{tpu_custom_call.1} parent=1 // pred_check
      _
    $region3: #{tpu_custom_call.1} parent=1 // pred_check_branch
      %9 = sbr.rel (0) target = $region5
    $region4: #{tpu_custom_call.1} parent=1 // pred_region
      %s11 = ssub.s32 256, 256
      %12 = vsyncadd [#allocation3], %s11
      %s14 = sshll.u32 [#allocation2], 4
      %s15 = int_to_ptr.vmem [resolvable:$true] %s14
      %17 = dma.hbm_to_vmem [thread:$0]  %s0, 256, %s15, [#allocation3]
    $region5: #{tpu_custom_call.1} parent=1 // pred_fallthru
      _
    // Predicated region
    $region6: #{tpu_custom_call.1} parent=1 // pred_check
      _
    $region7: #{tpu_custom_call.1} parent=1 // pred_check_branch
      %19 = sbr.rel (0) target = $region9
    $region8: #{tpu_custom_call.1} parent=1 // pred_region
      %20 = dma.done [#allocation3], 256
    $region9: #{tpu_custom_call.1} parent=1 // pred_fallthru
      _
    %v21 = vld [vmem:[#allocation2] sm:$0xff]
    %v22 = vld [vmem:[#allocation2 + $0x8] sm:$0xff]
    %v23 = vadd.f32 %v21, 1e-30
    %v24 = vadd.f32 %v22, 1e-30
    %v25 = vsub.f32 0.0, %v23
    %v26 = vsub.f32 0.0, %v24
    %v27 = vlog2.pop %v23
    %v28 = vmul.f32 %v27, 0.6931472
    %v29 = vlog2.pop %v24
    %v30 = vmul.f32 %v29, 0.6931472
    %v31 = vmul.f32 %v25, %v28
    %v32 = vmul.f32 %v26, %v30
    %33 = vst [vmem:[#allocation5] sm:$0xff] %v31
    %34 = vst [vmem:[#allocation5 + $0x8] sm:$0xff] %v32
    // Predicated region
    $region10: #{tpu_custom_call.1} parent=1 // pred_check
      _
    $region11: #{tpu_custom_call.1} parent=1 // pred_check_branch
      %36 = sbr.rel (0) target = $region13
    $region12: #{tpu_custom_call.1} parent=1 // pred_region
      %s38 = ssub.s32 256, 256
      %39 = vsyncadd [#allocation4], %s38
      %s41 = sshll.u32 [#allocation5], 4
      %s42 = int_to_ptr.vmem [resolvable:$true] %s41
      %44 = dma.vmem_to_hbm [thread:$0]  %s42, 256, %s1, [#allocation4]
    $region13: #{tpu_custom_call.1} parent=1 // pred_fallthru
      _
    // Predicated region
    $region14: #{tpu_custom_call.1} parent=1 // pred_check
      _
    $region15: #{tpu_custom_call.1} parent=1 // pred_check_branch
      %46 = sbr.rel (0) target = $region17
    $region16: #{tpu_custom_call.1} parent=1 // pred_region
      %47 = dma.done [#allocation4], 256
    $region17: #{tpu_custom_call.1} parent=1 // pred_fallthru
      _
    %48 = vsyncpa [#allocation3], 1
    %49 = vsyncpa [#allocation4], 1

</llo_original>
